<compile_context>
chip_gen: v7x
topology: tpu7x:2x2x1
jax: 0.10.0
libtpu: 0.0.40
codegen_flags: <defaults>
</compile_context>

<pallas_src>
import functools

import jax
import jax.numpy as jnp
from jax import lax
from jax.experimental import pallas as pl
from jax.experimental.pallas import tpu as pltpu

# Contract dim 1 of x [tm, K] with dim 1 of weight [tn, K]  ->  [tm, tn].
_DN_NT = (((1,), (1,)), ((), ()))


def _linear_kernel_fullk(x_ref, w_ref, b_ref, o_ref):
    """grid = (M/tm, N/tn); whole K panel resident -> one MXU call + epilogue."""
    acc = lax.dot_general(
        x_ref[...], w_ref[...],
        dimension_numbers=_DN_NT,
        preferred_element_type=jnp.float32,
    )
    o_ref[...] = (acc + b_ref[...].astype(jnp.float32)).astype(o_ref.dtype)


def _linear_kernel_ktiled(x_ref, w_ref, b_ref, o_ref, acc_ref, *, n_k, k_rem):
    """grid = (M/tm, N/tn, K/tk); f32 VMEM accumulator, bias fused at last k."""
    k = pl.program_id(2)

    @pl.when(k == 0)
    def _():
        acc_ref[...] = jnp.zeros_like(acc_ref)

    x = x_ref[...]
    w = w_ref[...]
    if k_rem:  # static: only emitted when K % tk != 0
        # The last reduction block is partial: zero the out-of-bounds K lanes
        # of BOTH operands so stale VMEM contents (possibly NaN) cannot leak
        # into the accumulator. M/N padding never needs masking (stores are
        # clipped to the array bounds).
        valid = jnp.where(k == n_k - 1, k_rem, x.shape[1])
        x = jnp.where(lax.broadcasted_iota(jnp.int32, x.shape, 1) < valid,
                      x, jnp.zeros_like(x))
        w = jnp.where(lax.broadcasted_iota(jnp.int32, w.shape, 1) < valid,
                      w, jnp.zeros_like(w))

    acc_ref[...] += lax.dot_general(
        x, w, dimension_numbers=_DN_NT, preferred_element_type=jnp.float32
    )

    @pl.when(k == n_k - 1)
    def _():
        o_ref[...] = (
            acc_ref[...] + b_ref[...].astype(jnp.float32)
        ).astype(o_ref.dtype)


@functools.partial(jax.jit, static_argnames=("tm", "tn", "tk", "k_full_max"))
def meta_linear_forward(x, weight, bias, *, tm=512, tn=512, tk=512,
                        k_full_max=2048):
    """y = x @ weight.T + bias (PyTorch F.linear semantics).

    x:      [..., in_features]           (native dtype kept end-to-end)
    weight: [out_features, in_features]  (native nn.Linear layout, no transpose)
    bias:   [out_features]
    """
    *lead, K = x.shape
    N, Kw = weight.shape
    if K != Kw:
        raise ValueError("in_features mismatch between x and weight")

    out_dtype = x.dtype
    x2 = x.reshape(-1, K)          # [M, K] — contiguous flatten, no copy
    M = x2.shape[0]
    b2 = bias.reshape(1, N)        # [1, N]

    # Full-dim blocks are always layout-legal; otherwise the 512 defaults are
    # (8,128)-aligned and partial edge blocks on M/N are handled by Pallas.
    tm = min(tm, M)
    tn = min(tn, N)
    grid_m = pl.cdiv(M, tm)
    grid_n = pl.cdiv(N, tn)

    if K <= k_full_max:
        # Whole K panel resident: 2-D grid, no accumulator scratch, no
        # reduction-axis revisits, bias added right after the single dot.
        tk_eff = K
        kernel = _linear_kernel_fullk
        grid = (grid_m, grid_n)
        in_specs = [
            pl.BlockSpec((tm, K), lambda i, j: (i, 0)),   # x tile  [tm, K]
            pl.BlockSpec((tn, K), lambda i, j: (j, 0)),   # W tile  [tn, K] (native [N,K])
            pl.BlockSpec((1, tn), lambda i, j: (0, j)),   # bias tile
        ]
        out_specs = pl.BlockSpec((tm, tn), lambda i, j: (i, j))
        scratch_shapes = []
        dim_sems = ("parallel", "parallel")
    else:
        tk_eff = min(tk, K)
        n_k = pl.cdiv(K, tk_eff)
        k_rem = K % tk_eff
        kernel = functools.partial(_linear_kernel_ktiled, n_k=n_k, k_rem=k_rem)
        grid = (grid_m, grid_n, n_k)
        in_specs = [
            pl.BlockSpec((tm, tk_eff), lambda i, j, k: (i, k)),
            pl.BlockSpec((tn, tk_eff), lambda i, j, k: (j, k)),
            pl.BlockSpec((1, tn), lambda i, j, k: (0, j)),
        ]
        out_specs = pl.BlockSpec((tm, tn), lambda i, j, k: (i, j))
        scratch_shapes = [pltpu.VMEM((tm, tn), jnp.float32)]
        dim_sems = ("parallel", "parallel", "arbitrary")

    # VMEM budget derived from the actual tiles (double-buffered operands +
    # f32 accumulator). Stays well under v7x's 64 MiB physical VMEM while
    # lifting the 16/32 MiB scoped default on v5e/v6e.
    bx = jnp.dtype(x.dtype).itemsize
    bw = jnp.dtype(weight.dtype).itemsize
    bb = jnp.dtype(bias.dtype).itemsize
    bo = jnp.dtype(out_dtype).itemsize
    est = (2 * tm * tk_eff * bx + 2 * tn * tk_eff * bw
           + 2 * tm * tn * bo + 2 * tn * bb
           + (tm * tn * 4 if scratch_shapes else 0))
    vmem_limit = int(min(96 * 1024 * 1024, max(32 * 1024 * 1024, 2 * est)))

    out = pl.pallas_call(
        kernel,
        out_shape=jax.ShapeDtypeStruct((M, N), out_dtype),
        grid_spec=pltpu.PrefetchScalarGridSpec(
            num_scalar_prefetch=0,
            grid=grid,
            in_specs=in_specs,
            out_specs=out_specs,
            scratch_shapes=scratch_shapes,
        ),
        compiler_params=pltpu.CompilerParams(
            dimension_semantics=dim_sems,
            vmem_limit_bytes=vmem_limit,
        ),
    )(x2, weight, b2)

    return out.reshape(*lead, N)


def reference_forward(x, weight, bias):
    """Pure-JAX reference (F.linear semantics), f32."""
    return (jnp.einsum("...k,nk->...n", x.astype(jnp.float32),
                       weight.astype(jnp.float32))
            + bias.astype(jnp.float32))


# TODO(synk): MetaModule's parameter bookkeeping (update_params / set_param /
# copy) is host-side Python plumbing for meta-learning, not part of the
# forward pass, so it is intentionally not translated to a kernel.

if __name__ == "__main__":
    # Shapes consistent with MetaLinear: x [batch, seq, in_features].
    B, S, F_IN, F_OUT = 8, 16, 32, 64
    key = jax.random.PRNGKey(0)
    k_x, k_w, k_b = jax.random.split(key, 3)

    # 1) float32, single full-K panel path (tight tolerance).
    x = jax.random.normal(k_x, (B, S, F_IN), dtype=jnp.float32)
    weight = jax.random.normal(k_w, (F_OUT, F_IN), dtype=jnp.float32) / jnp.sqrt(F_IN)
    bias = jax.random.normal(k_b, (F_OUT,), dtype=jnp.float32) * 0.01

    out = jax.block_until_ready(meta_linear_forward(x, weight, bias))
    ref = reference_forward(x, weight, bias)
    assert out.shape == (B, S, F_OUT)
    assert out.dtype == x.dtype
    assert jnp.allclose(out, ref, atol=1e-4, rtol=1e-4), "f32 mismatch vs reference"

    # 2) bfloat16 smoke test: operands stay bf16 end-to-end, f32 MXU accumulate,
    #    output emitted directly in bf16.
    xb = x.astype(jnp.bfloat16)
    wb = weight.astype(jnp.bfloat16)
    bb = bias.astype(jnp.bfloat16)
    out_bf16 = jax.block_until_ready(meta_linear_forward(xb, wb, bb))
    assert out_bf16.dtype == jnp.bfloat16
    assert jnp.allclose(out_bf16.astype(jnp.float32), ref, atol=5e-2, rtol=5e-2), \
        "bf16 mismatch vs reference"

    # 3) K-tiled accumulator path with ragged M/N/K edges (forced via k_full_max=0).
    M2, K2, N2 = 72, 160, 192
    k1, k2, k3 = jax.random.split(jax.random.PRNGKey(1), 3)
    x2 = jax.random.normal(k1, (M2, K2), dtype=jnp.float32)
    w2 = jax.random.normal(k2, (N2, K2), dtype=jnp.float32) / jnp.sqrt(K2)
    b2 = jax.random.normal(k3, (N2,), dtype=jnp.float32) * 0.01
    out2 = jax.block_until_ready(
        meta_linear_forward(x2, w2, b2, tm=64, tn=128, tk=128, k_full_max=0))
    ref2 = reference_forward(x2, w2, b2)
    assert out2.shape == (M2, N2)
    assert jnp.allclose(out2, ref2, atol=1e-3, rtol=1e-3), "k-tiled mismatch vs reference"

    print("KERNEL_OK")
</pallas_src>

<mosaic_0001>
module attributes {stable_mosaic.version = 11 : i64} {
  func.func @_linear_kernel_fullk(%arg0: i32, %arg1: i32, %arg2: memref<128x32xf32, #tpu.memory_space<vmem>>, %arg3: memref<64x32xf32, #tpu.memory_space<vmem>>, %arg4: memref<1x64xf32, #tpu.memory_space<vmem>>, %arg5: memref<128x64xf32, #tpu.memory_space<vmem>>) attributes {dimension_semantics = [#tpu.dimension_semantics<parallel>, #tpu.dimension_semantics<parallel>], iteration_bounds = array<i64: 1, 1>, scalar_prefetch = 0 : i64, scratch_operands = 0 : i64, tpu.core_type = #tpu.core_type<tc>, window_params = [{transform_indices = @transform_0, window_bounds = array<i64: 128, 32>}, {transform_indices = @transform_1, window_bounds = array<i64: 64, 32>}, {transform_indices = @transform_2, window_bounds = array<i64: 1, 64>}, {transform_indices = @transform_3, window_bounds = array<i64: 128, 64>}]} {
    %c0 = arith.constant 0 : index
    %c0_0 = arith.constant 0 : index
    %0 = vector.load %arg2[%c0, %c0_0] : memref<128x32xf32, #tpu.memory_space<vmem>>, vector<128x32xf32>
    %c0_1 = arith.constant 0 : index
    %c0_2 = arith.constant 0 : index
    %1 = vector.load %arg3[%c0_1, %c0_2] : memref<64x32xf32, #tpu.memory_space<vmem>>, vector<64x32xf32>
    %cst = arith.constant dense<0.000000e+00> : vector<128x64xf32>
    %2 = tpu.matmul %0, %1, %cst {dimension_numbers = #tpu.dot_dimension_numbers<[1], [1], [0], [0], [0, 0, 1, 0], [], []>} : vector<128x32xf32>, vector<64x32xf32>, vector<128x64xf32> -> vector<128x64xf32>
    %c0_3 = arith.constant 0 : index
    %c0_4 = arith.constant 0 : index
    %3 = vector.load %arg4[%c0_3, %c0_4] : memref<1x64xf32, #tpu.memory_space<vmem>>, vector<1x64xf32>
    %4 = vector.broadcast %3 : vector<1x64xf32> to vector<128x64xf32>
    %5 = arith.addf %2, %4 : vector<128x64xf32>
    %c0_5 = arith.constant 0 : index
    %c0_6 = arith.constant 0 : index
    %6 = vector.load %arg5[%c0_5, %c0_6] : memref<128x64xf32, #tpu.memory_space<vmem>>, vector<128x64xf32>
    tpu.vector_store %arg5[%c0_5, %c0_6], %5 {strides = array<i32>} : memref<128x64xf32, #tpu.memory_space<vmem>>, vector<128x64xf32>,
    return
  }
  func.func @transform_0(%arg0: i32, %arg1: i32) -> (i32, i32) {
    %c0_i32 = arith.constant 0 : i32
    %c0_i32_0 = arith.constant 0 : i32
    return %arg0, %c0_i32 : i32, i32
  }
  func.func @transform_1(%arg0: i32, %arg1: i32) -> (i32, i32) {
    %c0_i32 = arith.constant 0 : i32
    %c0_i32_0 = arith.constant 0 : i32
    return %arg1, %c0_i32 : i32, i32
  }
  func.func @transform_2(%arg0: i32, %arg1: i32) -> (i32, i32) {
    %c0_i32 = arith.constant 0 : i32
    %c0_i32_0 = arith.constant 0 : i32
    return %c0_i32, %arg1 : i32, i32
  }
  func.func @transform_3(%arg0: i32, %arg1: i32) -> (i32, i32) {
    %c0_i32 = arith.constant 0 : i32
    return %arg0, %arg1 : i32, i32
  }
}

</mosaic_0001>

<llo_original>
// kernel: meta_linear_forward.1
$region0: #{meta_linear_forward.1}
  #allocation0 [shape = 'u32[]', space=smem, size = 0x4, offset = 0x4, fixed_abs, tag = 'smem constant byte address 0x4 - core index']
  #allocation1 [shape = 'u32[144,128]{1,0:T(1,128)}', space=vmem, size = 0x12000, scoped, tag = 'internal scratch']
  %s0 = inlined_call_operand.hbm [shape: f32[128,32], index: 0, kind: input, shape index: {}]
  %s1 = inlined_call_operand.vmem [shape: f32[64,32], index: 1, kind: input, shape index: {}]
  %s2 = inlined_call_operand.vmem [shape: f32[1,64], index: 2, kind: input, shape index: {}]
  %s3 = inlined_call_operand.hbm [shape: f32[128,64], index: 3, kind: output, shape index: {}]
  %s4 = sld [smem:[#allocation0]]
  $region26: #{meta_linear_forward.1} parent=0
    _
  %s6 = ssub.s32 1, %s4
  %s7 = scalar_select 0, %s6, %s4
  $region1: #{meta_linear_forward.1} parent=0
    #allocation2 [shape = 'u8[65536]{0}', space=vmem, size = 0x10000, scoped, tag = 'input window, operand 0, single buffered']
    #allocation3 [shape = 's32[1]{0}', space=sflag, size = 0x4, scoped, tag = 'scoped memory for meta_linear_forward.1']
    #allocation4 [shape = 's32[1]{0}', space=sflag, size = 0x4, scoped, tag = 'scoped memory for meta_linear_forward.1']
    #allocation5 [shape = 'u8[65536]{0}', space=vmem, size = 0x10000, scoped, tag = 'output window, operand 0, single buffered']
    %8 = vsyncpa [#allocation3], 0
    %9 = vsyncpa [#allocation4], 0
    // Predicated region
    $region2: #{meta_linear_forward.1} parent=1 // pred_check
      _
    $region3: #{meta_linear_forward.1} parent=1 // pred_check_branch
      %11 = sbr.rel (0) target = $region5
    $region4: #{meta_linear_forward.1} parent=1 // pred_region
      %s13 = ssub.s32 2048, 2048
      %14 = vsyncadd [#allocation3], %s13
      %s15 = sshll.u32 [#allocation2], 4
      %s16 = int_to_ptr.vmem [resolvable:$true] %s15
      %21 = dma.hbm_to_vmem [thread:$0]  %s0, 2048, %s16, [#allocation3], 128, 128, 8
    $region5: #{meta_linear_forward.1} parent=1 // pred_fallthru
      _
    // Predicated region
    $region6: #{meta_linear_forward.1} parent=1 // pred_check
      _
    $region7: #{meta_linear_forward.1} parent=1 // pred_check_branch
      %23 = sbr.rel (0) target = $region9
    $region8: #{meta_linear_forward.1} parent=1 // pred_region
      _
    $region9: #{meta_linear_forward.1} parent=1 // pred_fallthru
      _
    // Predicated region
    $region10: #{meta_linear_forward.1} parent=1 // pred_check
      _
    $region11: #{meta_linear_forward.1} parent=1 // pred_check_branch
      %25 = sbr.rel (0) target = $region13
    $region12: #{meta_linear_forward.1} parent=1 // pred_region
      _
    $region13: #{meta_linear_forward.1} parent=1 // pred_fallthru
      _
    // Predicated region
    $region14: #{meta_linear_forward.1} parent=1 // pred_check
      _
    $region15: #{meta_linear_forward.1} parent=1 // pred_check_branch
      %27 = sbr.rel (0) target = $region17
    $region16: #{meta_linear_forward.1} parent=1 // pred_region
      %28 = dma.done [#allocation3], 2048
    $region17: #{meta_linear_forward.1} parent=1 // pred_fallthru
      _
    %v29 = vld [vmem:[#allocation2] sm:$0xff]
    %v30 = vld [vmem:[#allocation2 + $0x8] sm:$0xff]
    %v31 = vld [vmem:[#allocation2 + $0x10] sm:$0xff]
    %v32 = vld [vmem:[#allocation2 + $0x18] sm:$0xff]
    %v33 = vld [vmem:[#allocation2 + $0x20] sm:$0xff]
    %v34 = vld [vmem:[#allocation2 + $0x28] sm:$0xff]
    %v35 = vld [vmem:[#allocation2 + $0x30] sm:$0xff]
    %v36 = vld [vmem:[#allocation2 + $0x38] sm:$0xff]
    %v37 = vld [vmem:[#allocation2 + $0x40] sm:$0xff]
    %v38 = vld [vmem:[#allocation2 + $0x48] sm:$0xff]
    %v39 = vld [vmem:[#allocation2 + $0x50] sm:$0xff]
    %v40 = vld [vmem:[#allocation2 + $0x58] sm:$0xff]
    %v41 = vld [vmem:[#allocation2 + $0x60] sm:$0xff]
    %v42 = vld [vmem:[#allocation2 + $0x68] sm:$0xff]
    %v43 = vld [vmem:[#allocation2 + $0x70] sm:$0xff]
    %v44 = vld [vmem:[#allocation2 + $0x78] sm:$0xff]
    %v45 = vld [vmem:[%s1] sm:$0xff]
    %v46 = vld [vmem:[%s1 + $0x8] sm:$0xff]
    %v47 = vld [vmem:[%s1 + $0x10] sm:$0xff]
    %v48 = vld [vmem:[%s1 + $0x18] sm:$0xff]
    %v49 = vld [vmem:[%s1 + $0x20] sm:$0xff]
    %v50 = vld [vmem:[%s1 + $0x28] sm:$0xff]
    %v51 = vld [vmem:[%s1 + $0x30] sm:$0xff]
    %v52 = vld [vmem:[%s1 + $0x38] sm:$0xff]
    %v53 = vld [vmem:[%s2] sm:$0x1]
    %v55 = vlaneseq
    %v56 = vshrl.u32 %v55, 7
    %v57 = vsub.s32 0, %v56
    %v58 = vrot.slane %v53, %v57
    %vm60 = vcmask 261120
    %v62 = vsel %vm60, %v29, 0
    %v65 = vsel %vm60, %v30, 0
    %v68 = vsel %vm60, %v31, 0
    %v71 = vsel %vm60, %v32, 0
    %v74 = vsel %vm60, %v33, 0
    %v77 = vsel %vm60, %v34, 0
    %v80 = vsel %vm60, %v35, 0
    %v83 = vsel %vm60, %v36, 0
    %v86 = vsel %vm60, %v37, 0
    %v89 = vsel %vm60, %v38, 0
    %v92 = vsel %vm60, %v39, 0
    %v95 = vsel %vm60, %v40, 0
    %v98 = vsel %vm60, %v41, 0
    %v101 = vsel %vm60, %v42, 0
    %v104 = vsel %vm60, %v43, 0
    %v107 = vsel %vm60, %v44, 0
    %v110 = vsel %vm60, %v45, 0
    %v113 = vsel %vm60, %v46, 0
    %v116 = vsel %vm60, %v47, 0
    %v119 = vsel %vm60, %v48, 0
    %v122 = vsel %vm60, %v49, 0
    %v125 = vsel %vm60, %v50, 0
    %v128 = vsel %vm60, %v51, 0
    %v131 = vsel %vm60, %v52, 0
    %133 = vmatprep.subr.mxu0 0.0
    %134 = vmatpush1.xpose.msra.mxu0 %v110
    %135 = vmatprep.subr.mxu0 0.0
    %136 = vmatpush1.xpose.msra.mxu0 %v113
    %137 = vmatprep.subr.mxu0 0.0
    %138 = vmatpush1.xpose.msra.mxu0 %v116
    %139 = vmatprep.subr.mxu0 0.0
    %140 = vmatpush1.xpose.msra.mxu0 %v119
    %141 = vmatprep.subr.mxu0 0.0
    %142 = vmatpush1.xpose.msra.mxu0 %v122
    %143 = vmatprep.subr.mxu0 0.0
    %144 = vmatpush1.xpose.msra.mxu0 %v125
    %145 = vmatprep.subr.mxu0 0.0
    %146 = vmatpush1.xpose.msra.mxu0 %v128
    %147 = vmatprep.subr.mxu0 0.0
    %148 = vmatpush1.xpose.msra.mxu0 %v131
    %149 = vmatprep.subr.mxu0 0.0
    %150 = vmatpush1.xpose.msra.mxu0 0.0
    %151 = vmatprep.subr.mxu0 0.0
    %152 = vmatpush1.xpose.msra.mxu0 0.0
    %153 = vmatprep.subr.mxu0 0.0
    %154 = vmatpush1.xpose.msra.mxu0 0.0
    %155 = vmatprep.subr.mxu0 0.0
    %156 = vmatpush1.xpose.msra.mxu0 0.0
    %157 = vmatprep.subr.mxu0 0.0
    %158 = vmatpush1.xpose.msra.mxu0 0.0
    %159 = vmatprep.subr.mxu0 0.0
    %160 = vmatpush1.xpose.msra.mxu0 0.0
    %161 = vmatprep.subr.mxu0 0.0
    %162 = vmatpush1.xpose.msra.mxu0 0.0
    %163 = vmatprep.subr.mxu0 0.0
    %164 = vmatpush1.xpose.msra.mxu0 0.0
    %165 = vmatprep.subr.mxu0 0.0
    %166 = vmatpush1.xpose.msra.mxu0 0.0
    %167 = vmatprep.subr.mxu0 0.0
    %168 = vmatpush1.xpose.msra.mxu0 0.0
    %169 = vmatprep.subr.mxu0 0.0
    %170 = vmatpush1.xpose.msra.mxu0 0.0
    %171 = vmatprep.subr.mxu0 0.0
    %172 = vmatpush1.xpose.msra.mxu0 0.0
    %173 = vmatprep.subr.mxu0 0.0
    %174 = vmatpush1.xpose.msra.mxu0 0.0
    %175 = vmatprep.subr.mxu0 0.0
    %176 = vmatpush1.xpose.msra.mxu0 0.0
    %177 = vmatprep.subr.mxu0 0.0
    %178 = vmatpush1.xpose.msra.mxu0 0.0
    %179 = vmatprep.subr.mxu0 0.0
    %180 = vmatpush1.xpose.msra.mxu0 0.0
    %181 = vmatprep.subr.mxu0 0.0
    %182 = vmatpush1.xpose.msra.mxu0 0.0
    %183 = vmatprep.subr.mxu0 0.0
    %184 = vmatpush1.xpose.msra.mxu0 0.0
    %185 = vmatprep.subr.mxu0 0.0
    %186 = vmatpush1.xpose.msra.mxu0 0.0
    %187 = vmatprep.subr.mxu0 0.0
    %188 = vmatpush1.xpose.msra.mxu0 0.0
    %189 = vmatprep.subr.mxu0 0.0
    %190 = vmatpush1.xpose.msra.mxu0 0.0
    %191 = vmatprep.subr.mxu0 0.0
    %192 = vmatpush1.xpose.msra.mxu0 0.0
    %193 = vmatprep.subr.mxu0 0.0
    %194 = vmatpush1.xpose.msra.mxu0 0.0
    %195 = vmatprep.subr.mxu0 0.0
    %196 = vmatpush1.xpose.msra.mxu0 0.0
    %197 = vmatprep.mubr.f32.mxu0 0.0
    %198 = vmatmul.mubr.f32.gmra.mrb[0].mxu0 %v62
    %v199 = vpop.f32.mrb[0].mxu0
    %v200 = vadd.f32 %v58, %v199
    %v201 = vpop.f32.mrb[0].mxu0
    %202 = vmatprep.mubr.f32.mxu0 0.0
    %203 = vmatmul.mubr.f32.gmra.mrb[0].mxu0 %v65
    %v204 = vpop.f32.mrb[0].mxu0
    %v205 = vadd.f32 %v58, %v204
    %v206 = vpop.f32.mrb[0].mxu0
    %207 = vmatprep.mubr.f32.mxu0 0.0
    %208 = vmatmul.mubr.f32.gmra.mrb[0].mxu0 %v68
    %v209 = vpop.f32.mrb[0].mxu0
    %v210 = vadd.f32 %v58, %v209
    %v211 = vpop.f32.mrb[0].mxu0
    %212 = vmatprep.mubr.f32.mxu0 0.0
    %213 = vmatmul.mubr.f32.gmra.mrb[0].mxu0 %v71
    %v214 = vpop.f32.mrb[0].mxu0
    %v215 = vadd.f32 %v58, %v214
    %v216 = vpop.f32.mrb[0].mxu0
    %217 = vmatprep.mubr.f32.mxu0 0.0
    %218 = vmatmul.mubr.f32.gmra.mrb[0].mxu0 %v74
    %v219 = vpop.f32.mrb[0].mxu0
    %v220 = vadd.f32 %v58, %v219
    %v221 = vpop.f32.mrb[0].mxu0
    %222 = vmatprep.mubr.f32.mxu0 0.0
    %223 = vmatmul.mubr.f32.gmra.mrb[0].mxu0 %v77
    %v224 = vpop.f32.mrb[0].mxu0
    %v225 = vadd.f32 %v58, %v224
    %v226 = vpop.f32.mrb[0].mxu0
    %227 = vmatprep.mubr.f32.mxu0 0.0
    %228 = vmatmul.mubr.f32.gmra.mrb[0].mxu0 %v80
    %v229 = vpop.f32.mrb[0].mxu0
    %v230 = vadd.f32 %v58, %v229
    %v231 = vpop.f32.mrb[0].mxu0
    %232 = vmatprep.mubr.f32.mxu0 0.0
    %233 = vmatmul.mubr.f32.gmra.mrb[0].mxu0 %v83
    %v234 = vpop.f32.mrb[0].mxu0
    %v235 = vadd.f32 %v58, %v234
    %v236 = vpop.f32.mrb[0].mxu0
    %237 = vmatprep.mubr.f32.mxu0 0.0
    %238 = vmatmul.mubr.f32.gmra.mrb[0].mxu0 %v86
    %v239 = vpop.f32.mrb[0].mxu0
    %v240 = vadd.f32 %v58, %v239
    %v241 = vpop.f32.mrb[0].mxu0
    %242 = vmatprep.mubr.f32.mxu0 0.0
    %243 = vmatmul.mubr.f32.gmra.mrb[0].mxu0 %v89
    %v244 = vpop.f32.mrb[0].mxu0
    %v245 = vadd.f32 %v58, %v244
    %v246 = vpop.f32.mrb[0].mxu0
    %247 = vmatprep.mubr.f32.mxu0 0.0
    %248 = vmatmul.mubr.f32.gmra.mrb[0].mxu0 %v92
    %v249 = vpop.f32.mrb[0].mxu0
    %v250 = vadd.f32 %v58, %v249
    %v251 = vpop.f32.mrb[0].mxu0
    %252 = vmatprep.mubr.f32.mxu0 0.0
    %253 = vmatmul.mubr.f32.gmra.mrb[0].mxu0 %v95
    %v254 = vpop.f32.mrb[0].mxu0
    %v255 = vadd.f32 %v58, %v254
    %v256 = vpop.f32.mrb[0].mxu0
    %257 = vmatprep.mubr.f32.mxu0 0.0
    %258 = vmatmul.mubr.f32.gmra.mrb[0].mxu0 %v98
    %v259 = vpop.f32.mrb[0].mxu0
    %v260 = vadd.f32 %v58, %v259
    %v261 = vpop.f32.mrb[0].mxu0
    %262 = vmatprep.mubr.f32.mxu0 0.0
    %263 = vmatmul.mubr.f32.gmra.mrb[0].mxu0 %v101
    %v264 = vpop.f32.mrb[0].mxu0
    %v265 = vadd.f32 %v58, %v264
    %v266 = vpop.f32.mrb[0].mxu0
    %267 = vmatprep.mubr.f32.mxu0 0.0
    %268 = vmatmul.mubr.f32.gmra.mrb[0].mxu0 %v104
    %v269 = vpop.f32.mrb[0].mxu0
    %v270 = vadd.f32 %v58, %v269
    %v271 = vpop.f32.mrb[0].mxu0
    %272 = vmatprep.mubr.f32.mxu0 0.0
    %273 = vmatmul.mubr.f32.gmra.mrb[0].mxu0 %v107
    %v274 = vpop.f32.mrb[0].mxu0
    %v275 = vadd.f32 %v58, %v274
    %v276 = vpop.f32.mrb[0].mxu0
    %277 = vdwg.mxu0
    %vm278 = vcmask 523264
    %279 = vst.msk [vmem:[#allocation5] sm:$0xff] %vm278, %v200
    %280 = vst.msk [vmem:[#allocation5 + $0x8] sm:$0xff] %vm278, %v205
    %281 = vst.msk [vmem:[#allocation5 + $0x10] sm:$0xff] %vm278, %v210
    %282 = vst.msk [vmem:[#allocation5 + $0x18] sm:$0xff] %vm278, %v215
    %283 = vst.msk [vmem:[#allocation5 + $0x20] sm:$0xff] %vm278, %v220
    %284 = vst.msk [vmem:[#allocation5 + $0x28] sm:$0xff] %vm278, %v225
    %285 = vst.msk [vmem:[#allocation5 + $0x30] sm:$0xff] %vm278, %v230
    %286 = vst.msk [vmem:[#allocation5 + $0x38] sm:$0xff] %vm278, %v235
    %287 = vst.msk [vmem:[#allocation5 + $0x40] sm:$0xff] %vm278, %v240
    %288 = vst.msk [vmem:[#allocation5 + $0x48] sm:$0xff] %vm278, %v245
    %289 = vst.msk [vmem:[#allocation5 + $0x50] sm:$0xff] %vm278, %v250
    %290 = vst.msk [vmem:[#allocation5 + $0x58] sm:$0xff] %vm278, %v255
    %291 = vst.msk [vmem:[#allocation5 + $0x60] sm:$0xff] %vm278, %v260
    %292 = vst.msk [vmem:[#allocation5 + $0x68] sm:$0xff] %vm278, %v265
    %293 = vst.msk [vmem:[#allocation5 + $0x70] sm:$0xff] %vm278, %v270
    %294 = vst.msk [vmem:[#allocation5 + $0x78] sm:$0xff] %vm278, %v275
    // Predicated region
    $region18: #{meta_linear_forward.1} parent=1 // pred_check
      _
    $region19: #{meta_linear_forward.1} parent=1 // pred_check_branch
      %296 = sbr.rel (0) target = $region21
    $region20: #{meta_linear_forward.1} parent=1 // pred_region
      %s298 = ssub.s32 2048, 2048
      %299 = vsyncadd [#allocation4], %s298
      %s300 = sshll.u32 [#allocation5], 4
      %s301 = int_to_ptr.vmem [resolvable:$true] %s300
      %306 = dma.vmem_to_hbm [thread:$0]  %s301, 2048, %s3, [#allocation4], 128, 128, 8
    $region21: #{meta_linear_forward.1} parent=1 // pred_fallthru
      _
    // Predicated region
    $region22: #{meta_linear_forward.1} parent=1 // pred_check
      _
    $region23: #{meta_linear_forward.1} parent=1 // pred_check_branch
      %308 = sbr.rel (0) target = $region25
    $region24: #{meta_linear_forward.1} parent=1 // pred_region
      %309 = dma.done [#allocation4], 2048
    $region25: #{meta_linear_forward.1} parent=1 // pred_fallthru
      _
    %310 = vsyncpa [#allocation3], 1
    %311 = vsyncpa [#allocation4], 1

</llo_original>
